<compile_context>
chip_gen: v7x
topology: tpu7x:2x2x1
jax: 0.10.0
libtpu: 0.0.40
codegen_flags: <defaults>
</compile_context>

<pallas_src>
import math

import jax
import jax.numpy as jnp
from jax import lax
from jax.experimental import pallas as pl
from jax.experimental.pallas import tpu as pltpu


_NEG_LARGE = -1e30  # finite stand-in for -inf (keeps exp/max NaN-free)


# ---------------------------------------------------------------------------
# tile / VMEM helpers
# ---------------------------------------------------------------------------

def _sublane_align(dtype):
    itemsize = jnp.dtype(dtype).itemsize
    if itemsize >= 4:
        return 8
    if itemsize == 2:
        return 16
    return 32


def _pick_tile(dim, preferred, align):
    """Largest `align`-multiple <= preferred that divides `dim`, else full dim."""
    if dim <= preferred:
        return dim
    t = (preferred // align) * align
    while t >= align:
        if dim % t == 0:
            return t
        t -= align
    return dim


def _vmem_budget_bytes():
    # Physical VMEM per TensorCore differs across generations (128 MiB on
    # v5e/v6e, 64 MiB on v7x); keep ~25% headroom for compiler scratch.
    try:
        cap = int(pltpu.get_tpu_info().vmem_capacity_bytes)
    except Exception:
        cap = 64 * 2**20
    return (cap * 3) // 4


def _vmem_limit(nbytes, budget):
    want = int(1.5 * nbytes) + (4 << 20)
    return int(min(budget, max(16 << 20, want)))


# ---------------------------------------------------------------------------
# kernels
# ---------------------------------------------------------------------------

def _make_flash_kernel(has_mask, mask_is_3d, mask_is_bool, scale, compute_dtype):
    """needs_weights=False path: online softmax over KV blocks."""

    def kernel(*refs):
        q_ref, k_ref, v_ref = refs[0], refs[1], refs[2]
        idx = 3
        m_ref = None
        if has_mask:
            m_ref = refs[3]
            idx = 4
        out_ref = refs[idx]
        qs_sc, m_sc, l_sc, acc_sc = refs[idx + 1], refs[idx + 2], refs[idx + 3], refs[idx + 4]

        ki = pl.program_id(2)

        @pl.when(ki == 0)
        def _():
            # Q block is resident across the KV axis: scale it once (in f32 for
            # precision), cast to the MXU operand dtype, reuse every KV step.
            qs_sc[...] = (q_ref[0].astype(jnp.float32) * scale).astype(compute_dtype)
            m_sc[...] = jnp.full_like(m_sc, -jnp.inf)
            l_sc[...] = jnp.zeros_like(l_sc)
            acc_sc[...] = jnp.zeros_like(acc_sc)

        q = qs_sc[...]                              # (TQ, K) compute dtype
        k = k_ref[0].astype(compute_dtype)          # (TK, K)
        v = v_ref[0].astype(compute_dtype)          # (TK, V)

        # QK^T without materializing k.T (contract last dims of both).
        s = lax.dot_general(
            q, k, (((1,), (1,)), ((), ())),
            preferred_element_type=jnp.float32)      # (TQ, TK) f32

        if has_mask:
            mblk = m_ref[0] if mask_is_3d else m_ref[...]
            if mask_is_bool:
                # nonzero = attend, zero = masked out; zero HBM float traffic.
                s = jnp.where(mblk != 0, s, _NEG_LARGE)
            else:
                s = s + mblk.astype(jnp.float32)

        m_prev = m_sc[...]
        m_new = jnp.maximum(m_prev, jnp.max(s, axis=-1, keepdims=True))
        # Clamp: fully -inf rows (e.g. -inf float masks) stay NaN-free.
        m_new = jnp.maximum(m_new, _NEG_LARGE)
        alpha = jnp.exp(m_prev - m_new)
        p = jnp.exp(s - m_new)
        l_sc[...] = alpha * l_sc[...] + jnp.sum(p, axis=-1, keepdims=True)
        acc_sc[...] = alpha * acc_sc[...] + lax.dot_general(
            p.astype(compute_dtype), v, (((1,), (0,)), ((), ())),
            preferred_element_type=jnp.float32)
        m_sc[...] = m_new

        @pl.when(ki == pl.num_programs(2) - 1)
        def _():
            # Exact normalization: runs once per query tile on (TQ, 1) values,
            # essentially free; guard l == 0 (fully masked rows -> zero output).
            l = l_sc[...]
            l = jnp.where(l == 0.0, 1.0, l)
            out_ref[0] = (acc_sc[...] / l).astype(out_ref.dtype)

    return kernel


def _make_weights_kernel(has_mask, mask_is_3d, mask_is_bool, scale, compute_dtype):
    """needs_weights=True path: full S_kv per query tile, lane-dense weights."""

    def kernel(*refs):
        q_ref, k_ref, v_ref = refs[0], refs[1], refs[2]
        idx = 3
        m_ref = None
        if has_mask:
            m_ref = refs[3]
            idx = 4
        out_ref, attn_ref = refs[idx], refs[idx + 1]

        q = (q_ref[0].astype(jnp.float32) * scale).astype(compute_dtype)  # (TQ, K)
        k = k_ref[0].astype(compute_dtype)                                # (S_kv, K)
        v = v_ref[0].astype(compute_dtype)                                # (S_kv, V)

        s = lax.dot_general(
            q, k, (((1,), (1,)), ((), ())),
            preferred_element_type=jnp.float32)      # (TQ, S_kv) f32
        if has_mask:
            mblk = m_ref[0] if mask_is_3d else m_ref[...]
            if mask_is_bool:
                s = jnp.where(mblk != 0, s, _NEG_LARGE)
            else:
                s = s + mblk.astype(jnp.float32)

        s_max = jnp.maximum(jnp.max(s, axis=-1, keepdims=True), _NEG_LARGE)
        p = jnp.exp(s - s_max)
        denom = jnp.sum(p, axis=-1, keepdims=True)
        denom = jnp.where(denom == 0.0, 1.0, denom)
        attn = p / denom                             # exact; weights are exposed

        attn_ref[0] = attn.astype(attn_ref.dtype)
        out = lax.dot_general(
            attn.astype(compute_dtype), v, (((1,), (0,)), ((), ())),
            preferred_element_type=jnp.float32)
        out_ref[0] = out.astype(out_ref.dtype)

    return kernel


# ---------------------------------------------------------------------------
# wrapper
# ---------------------------------------------------------------------------

def sdpa(queries, keys, values, mask=None, needs_weights=False, *,
         attn_dropout_p=0.0, use_bf16_matmul=False, tq=None, tk=None):
    """Pallas SDPA forward.

    queries: (N, S, K), keys: (N, S_kv, K), values: (N, S_kv, V)
    mask: None, (S, S_kv) or (N, S, S_kv).
          * floating dtype  -> additive mask (fairseq2 semantics)
          * bool / integer  -> "keep" mask: True / nonzero = attend (streamed as
            int8 to cut mask HBM traffic 4x vs a dense f32 mask)
    use_bf16_matmul: cast f32 operands to bf16 on the MXU (f32 accumulation).
    returns (attn_out (N, S, V), attn_weights (N, S, S_kv) or None)
    """
    if attn_dropout_p > 0.0:
        # TODO(synk): attention dropout is not implemented in the kernel.
        raise NotImplementedError("attn_dropout_p > 0 is not supported")

    N, S, K = queries.shape
    _, S_kv, _ = keys.shape
    V = values.shape[-1]
    scale = 1.0 / math.sqrt(K)

    in_dtype = queries.dtype
    compute_dtype = jnp.bfloat16 if (use_bf16_matmul and in_dtype == jnp.float32) else in_dtype

    has_mask = mask is not None
    mask_is_3d = False
    mask_is_bool = False
    if has_mask:
        if mask.ndim == 3 and mask.shape[0] == 1:
            mask = mask[0]                # shared across batch -> keep one copy
        if mask.ndim not in (2, 3):
            raise ValueError("mask must be (S, S_kv) or (N, S, S_kv)")
        mask_is_3d = mask.ndim == 3
        if mask.dtype == jnp.bool_ or jnp.issubdtype(mask.dtype, jnp.integer):
            mask_is_bool = True
            if mask.dtype == jnp.bool_:
                mask = mask.astype(jnp.int8)

    in_itemsize = jnp.dtype(in_dtype).itemsize
    out_itemsize = in_itemsize
    mask_itemsize = jnp.dtype(mask.dtype).itemsize if has_mask else 0

    # Sublane alignment for the query-tile dim, dtype-aware (packed sublanes).
    align = _sublane_align(in_dtype)
    if has_mask:
        align = max(align, _sublane_align(mask.dtype))

    budget = _vmem_budget_bytes()

    # Query tile: bigger for sub-32-bit inputs (v6e HBM roofline wants ~512).
    pref_tq = 512 if in_itemsize <= 2 else 256
    TQ = tq if tq is not None else _pick_tile(S, pref_tq, align)
    if tq is None and N * (S // TQ) < 2:
        # Keep >= 2 parallel blocks so a 2-TC chip (v7x) isn't half idle.
        smaller = _pick_tile(S, max(align, TQ // 2), align)
        if smaller < TQ and S // smaller >= 2:
            TQ = smaller
    assert S % TQ == 0 and (TQ % 8 == 0 or TQ == S), "invalid tq"

    if not needs_weights:
        # ---------------- flash path: no weights tensor ever produced ---------
        TK = tk if tk is not None else _pick_tile(S_kv, 512, 128)
        assert S_kv % TK == 0 and (TK % 128 == 0 or TK == S_kv), "invalid tk"

        in_specs = [
            pl.BlockSpec((1, TQ, K), lambda b, qi, ki: (b, qi, 0)),
            pl.BlockSpec((1, TK, K), lambda b, qi, ki: (b, ki, 0)),
            pl.BlockSpec((1, TK, V), lambda b, qi, ki: (b, ki, 0)),
        ]
        args = [queries, keys, values]
        if has_mask:
            if mask_is_3d:
                in_specs.append(
                    pl.BlockSpec((1, TQ, TK), lambda b, qi, ki: (b, qi, ki)))
            else:
                in_specs.append(
                    pl.BlockSpec((TQ, TK), lambda b, qi, ki: (qi, ki)))
            args.append(mask)

        blk_bytes = 2 * (TQ * K + TK * K + TK * V) * in_itemsize + 2 * TQ * V * out_itemsize
        if has_mask:
            blk_bytes += 2 * TQ * TK * mask_itemsize
        scratch_bytes = TQ * K * jnp.dtype(compute_dtype).itemsize + (2 * TQ + TQ * V) * 4
        tmp_bytes = 4 * TQ * TK * 4       # score/exp temporaries headroom
        limit = _vmem_limit(blk_bytes + scratch_bytes + tmp_bytes, budget)

        out = pl.pallas_call(
            _make_flash_kernel(has_mask, mask_is_3d, mask_is_bool, scale, compute_dtype),
            out_shape=jax.ShapeDtypeStruct((N, S, V), in_dtype),
            grid_spec=pltpu.PrefetchScalarGridSpec(
                num_scalar_prefetch=0,
                grid=(N, S // TQ, S_kv // TK),
                in_specs=in_specs,
                out_specs=pl.BlockSpec((1, TQ, V), lambda b, qi, ki: (b, qi, 0)),
                scratch_shapes=[
                    pltpu.VMEM((TQ, K), compute_dtype),    # scaled Q (hoisted)
                    pltpu.VMEM((TQ, 1), jnp.float32),      # running max
                    pltpu.VMEM((TQ, 1), jnp.float32),      # running denom
                    pltpu.VMEM((TQ, V), jnp.float32),      # output accumulator
                ],
            ),
            compiler_params=pltpu.CompilerParams(
                dimension_semantics=("parallel", "parallel", "arbitrary"),
                vmem_limit_bytes=limit,
            ),
        )(*args)
        return out, None

    # ---------------- weights path: full S_kv per query tile ------------------
    def _weights_estimate(tq_):
        est = 2 * (tq_ * K + S_kv * K + S_kv * V) * in_itemsize
        est += 2 * (tq_ * V + tq_ * S_kv) * out_itemsize
        if has_mask:
            est += 2 * tq_ * S_kv * mask_itemsize
        est += 3 * tq_ * S_kv * 4 + tq_ * V * 4      # f32 temporaries
        return est

    # Shrink TQ until the (double-buffered) working set fits the VMEM budget.
    while _weights_estimate(TQ) > budget and TQ > align:
        smaller = _pick_tile(S, max(align, TQ // 2), align)
        if smaller >= TQ:
            break
        TQ = smaller

    in_specs = [
        pl.BlockSpec((1, TQ, K), lambda b, qi: (b, qi, 0)),
        pl.BlockSpec((1, S_kv, K), lambda b, qi: (b, 0, 0)),
        pl.BlockSpec((1, S_kv, V), lambda b, qi: (b, 0, 0)),
    ]
    args = [queries, keys, values]
    if has_mask:
        if mask_is_3d:
            in_specs.append(pl.BlockSpec((1, TQ, S_kv), lambda b, qi: (b, qi, 0)))
        else:
            in_specs.append(pl.BlockSpec((TQ, S_kv), lambda b, qi: (qi, 0)))
        args.append(mask)

    limit = _vmem_limit(_weights_estimate(TQ), budget)

    out, attn = pl.pallas_call(
        _make_weights_kernel(has_mask, mask_is_3d, mask_is_bool, scale, compute_dtype),
        out_shape=(
            jax.ShapeDtypeStruct((N, S, V), in_dtype),
            jax.ShapeDtypeStruct((N, S, S_kv), in_dtype),
        ),
        grid_spec=pltpu.PrefetchScalarGridSpec(
            num_scalar_prefetch=0,
            grid=(N, S // TQ),
            in_specs=in_specs,
            out_specs=[
                pl.BlockSpec((1, TQ, V), lambda b, qi: (b, qi, 0)),
                pl.BlockSpec((1, TQ, S_kv), lambda b, qi: (b, qi, 0)),
            ],
        ),
        compiler_params=pltpu.CompilerParams(
            dimension_semantics=("parallel", "parallel"),
            vmem_limit_bytes=limit,
        ),
    )(*args)
    return out, attn


# ---------------------------------------------------------------------------
# reference + test
# ---------------------------------------------------------------------------

def _reference_sdpa(q, k, v, mask):
    scale = 1.0 / math.sqrt(q.shape[-1])
    qf = q.astype(jnp.float32) * scale
    kf = k.astype(jnp.float32)
    s = jnp.einsum("nsk,ntk->nst", qf, kf)
    if mask is not None:
        if mask.dtype == jnp.bool_ or jnp.issubdtype(mask.dtype, jnp.integer):
            add = jnp.where(mask != 0, 0.0, _NEG_LARGE).astype(jnp.float32)
        else:
            add = mask.astype(jnp.float32)
        s = s + jnp.broadcast_to(add, s.shape)
    a = jax.nn.softmax(s, axis=-1)
    o = jnp.einsum("nst,ntv->nsv", a.astype(v.dtype).astype(jnp.float32),
                   v.astype(jnp.float32))
    return o.astype(q.dtype), a.astype(q.dtype)


def _check(got, want, atol, rtol, name):
    got = jnp.asarray(got, jnp.float32)
    want = jnp.asarray(want, jnp.float32)
    assert jnp.allclose(got, want, atol=atol, rtol=rtol), (
        f"{name}: max abs err {float(jnp.max(jnp.abs(got - want)))}")


if __name__ == "__main__":
    root = jax.random.PRNGKey(0)
    k0, k1, k2, k3, k4, k5, k6, k7, k8 = jax.random.split(root, 9)

    # --- 1) weights path: f32, shared 2-D additive mask, exact check --------
    N, S, S_kv, K, V = 2, 8, 8, 32, 32
    q = jax.random.normal(k0, (N, S, K), dtype=jnp.float32)
    k = jax.random.normal(k1, (N, S_kv, K), dtype=jnp.float32)
    v = jax.random.normal(k2, (N, S_kv, V), dtype=jnp.float32)
    mask2d = jnp.where(jax.random.bernoulli(k3, 0.2, (S, S_kv)),
                       -1e9, 0.0).astype(jnp.float32)

    out, attn = sdpa(q, k, v, mask2d, needs_weights=True)
    out = jax.block_until_ready(out)
    ref_out, ref_attn = _reference_sdpa(q, k, v, mask2d)
    _check(out, ref_out, 1e-4, 1e-4, "weights-path out")
    _check(attn, ref_attn, 1e-4, 1e-4, "weights-path attn")

    # --- shared flash-path inputs -------------------------------------------
    N2, S2, Skv2, K2, V2 = 2, 128, 256, 64, 64
    q2 = jax.random.normal(k4, (N2, S2, K2), dtype=jnp.float32)
    k2_ = jax.random.normal(k5, (N2, Skv2, K2), dtype=jnp.float32)
    v2 = jax.random.normal(k6, (N2, Skv2, V2), dtype=jnp.float32)
    mask3d = jnp.where(jax.random.bernoulli(k7, 0.15, (N2, S2, Skv2)),
                       -1e9, 0.0).astype(jnp.float32)

    # --- 2) flash path: f32, 3-D additive mask, multi-KV-step, exact check --
    out2, w2 = sdpa(q2, k2_, v2, mask3d, needs_weights=False, tq=64, tk=128)
    out2 = jax.block_until_ready(out2)
    assert w2 is None
    ref_out2, _ = _reference_sdpa(q2, k2_, v2, mask3d)
    _check(out2, ref_out2, 1e-4, 1e-4, "flash f32 masked out")

    # --- 3) flash path: no mask, f32, exact check ----------------------------
    out3, _ = sdpa(q2, k2_, v2, None, needs_weights=False, tq=64, tk=128)
    out3 = jax.block_until_ready(out3)
    ref_out3, _ = _reference_sdpa(q2, k2_, v2, None)
    _check(out3, ref_out3, 1e-4, 1e-4, "flash f32 unmasked out")

    # --- 4) flash path: bf16 inputs + bf16 additive mask ---------------------
    qb, kb, vb = (x.astype(jnp.bfloat16) for x in (q2, k2_, v2))
    maskb = mask3d.astype(jnp.bfloat16)
    out4, _ = sdpa(qb, kb, vb, maskb, needs_weights=False, tq=64, tk=128)
    out4 = jax.block_until_ready(out4)
    ref_out4, _ = _reference_sdpa(qb, kb, vb, maskb)
    _check(out4, ref_out4, 3e-2, 3e-2, "flash bf16 out")

    # --- 5) flash path: f32 inputs, bf16 MXU operands, boolean keep-mask -----
    keep = jax.random.bernoulli(k8, 0.85, (N2, S2, Skv2))   # True = attend
    out5, _ = sdpa(q2, k2_, v2, keep, needs_weights=False, tq=64, tk=128,
                   use_bf16_matmul=True)
    out5 = jax.block_until_ready(out5)
    ref_out5, _ = _reference_sdpa(q2, k2_, v2, keep)
    _check(out5, ref_out5, 3e-2, 3e-2, "flash bf16-matmul bool-mask out")

    print("KERNEL_OK")
</pallas_src>

<mosaic_0001>
module attributes {stable_mosaic.version = 11 : i64} {
  func.func @kernel(%arg0: i32, %arg1: i32, %arg2: memref<1x8x32xf32, #tpu.memory_space<vmem>>, %arg3: memref<1x8x32xf32, #tpu.memory_space<vmem>>, %arg4: memref<1x8x32xf32, #tpu.memory_space<vmem>>, %arg5: memref<8x8xf32, #tpu.memory_space<vmem>>, %arg6: memref<1x8x32xf32, #tpu.memory_space<vmem>>, %arg7: memref<1x8x8xf32, #tpu.memory_space<vmem>>) attributes {dimension_semantics = [#tpu.dimension_semantics<parallel>, #tpu.dimension_semantics<parallel>], iteration_bounds = array<i64: 2, 1>, scalar_prefetch = 0 : i64, scratch_operands = 0 : i64, tpu.core_type = #tpu.core_type<tc>, window_params = [{transform_indices = @transform_0, window_bounds = array<i64: 1, 8, 32>}, {transform_indices = @transform_1, window_bounds = array<i64: 1, 8, 32>}, {transform_indices = @transform_2, window_bounds = array<i64: 1, 8, 32>}, {transform_indices = @transform_3, window_bounds = array<i64: 8, 8>}, {transform_indices = @transform_4, window_bounds = array<i64: 1, 8, 32>}, {transform_indices = @transform_5, window_bounds = array<i64: 1, 8, 8>}]} {
    %c0 = arith.constant 0 : index
    %c0_0 = arith.constant 0 : index
    %c0_1 = arith.constant 0 : index
    %0 = vector.load %arg2[%c0, %c0_0, %c0_1] : memref<1x8x32xf32, #tpu.memory_space<vmem>>, vector<1x8x32xf32>
    %1 = vector.shape_cast %0 : vector<1x8x32xf32> to vector<8x32xf32>
    %cst = arith.constant 0.176776692 : f32
    %2 = vector.broadcast %cst : f32 to vector<8x32xf32>
    %3 = arith.mulf %1, %2 : vector<8x32xf32>
    %c0_2 = arith.constant 0 : index
    %c0_3 = arith.constant 0 : index
    %c0_4 = arith.constant 0 : index
    %4 = vector.load %arg3[%c0_2, %c0_3, %c0_4] : memref<1x8x32xf32, #tpu.memory_space<vmem>>, vector<1x8x32xf32>
    %5 = vector.shape_cast %4 : vector<1x8x32xf32> to vector<8x32xf32>
    %c0_5 = arith.constant 0 : index
    %c0_6 = arith.constant 0 : index
    %c0_7 = arith.constant 0 : index
    %6 = vector.load %arg4[%c0_5, %c0_6, %c0_7] : memref<1x8x32xf32, #tpu.memory_space<vmem>>, vector<1x8x32xf32>
    %7 = vector.shape_cast %6 : vector<1x8x32xf32> to vector<8x32xf32>
    %cst_8 = arith.constant dense<0.000000e+00> : vector<8x8xf32>
    %8 = tpu.matmul %3, %5, %cst_8 {dimension_numbers = #tpu.dot_dimension_numbers<[1], [1], [0], [0], [0, 0, 1, 0], [], []>} : vector<8x32xf32>, vector<8x32xf32>, vector<8x8xf32> -> vector<8x8xf32>
    %c0_9 = arith.constant 0 : index
    %c0_10 = arith.constant 0 : index
    %9 = vector.load %arg5[%c0_9, %c0_10] : memref<8x8xf32, #tpu.memory_space<vmem>>, vector<8x8xf32>
    %10 = arith.addf %8, %9 : vector<8x8xf32>
    %cst_11 = arith.constant dense<0xFF800000> : vector<8xf32>
    %11 = vector.multi_reduction <maximumf>, %10, %cst_11 [1] : vector<8x8xf32> to vector<8xf32>
    %12 = vector.shape_cast %11 : vector<8xf32> to vector<8x1xf32>
    %cst_12 = arith.constant -1.000000e+30 : f32
    %13 = vector.broadcast %cst_12 : f32 to vector<8x1xf32>
    %14 = arith.maximumf %12, %13 : vector<8x1xf32>
    %15 = vector.broadcast %14 : vector<8x1xf32> to vector<8x8xf32>
    %16 = arith.subf %10, %15 : vector<8x8xf32>
    %17 = math.exp %16 : vector<8x8xf32>
    %cst_13 = arith.constant dense<0.000000e+00> : vector<8xf32>
    %18 = vector.multi_reduction <add>, %17, %cst_13 [1] : vector<8x8xf32> to vector<8xf32>
    %19 = vector.shape_cast %18 : vector<8xf32> to vector<8x1xf32>
    %cst_14 = arith.constant 0.000000e+00 : f32
    %20 = vector.broadcast %cst_14 : f32 to vector<8x1xf32>
    %21 = arith.cmpf oeq, %19, %20 : vector<8x1xf32>
    %cst_15 = arith.constant 1.000000e+00 : f32
    %22 = vector.broadcast %cst_15 : f32 to vector<8x1xf32>
    %23 = arith.select %21, %22, %19 : vector<8x1xi1>, vector<8x1xf32>
    %24 = vector.broadcast %23 : vector<8x1xf32> to vector<8x8xf32>
    %25 = arith.divf %17, %24 : vector<8x8xf32>
    %c0_16 = arith.constant 0 : index
    %c0_17 = arith.constant 0 : index
    %c0_18 = arith.constant 0 : index
    %26 = vector.load %arg7[%c0_16, %c0_17, %c0_18] : memref<1x8x8xf32, #tpu.memory_space<vmem>>, vector<1x8x8xf32>
    %27 = vector.shape_cast %26 : vector<1x8x8xf32> to vector<8x8xf32>
    %28 = vector.shape_cast %25 : vector<8x8xf32> to vector<1x8x8xf32>
    tpu.vector_store %arg7[%c0_16, %c0_17, %c0_18], %28 {strides = array<i32>} : memref<1x8x8xf32, #tpu.memory_space<vmem>>, vector<1x8x8xf32>,
    %cst_19 = arith.constant dense<0.000000e+00> : vector<8x32xf32>
    %29 = tpu.matmul %25, %7, %cst_19 {dimension_numbers = #tpu.dot_dimension_numbers<[1], [0], [0], [1], [0, 0, 1, 1], [], []>} : vector<8x8xf32>, vector<8x32xf32>, vector<8x32xf32> -> vector<8x32xf32>
    %c0_20 = arith.constant 0 : index
    %c0_21 = arith.constant 0 : index
    %c0_22 = arith.constant 0 : index
    %30 = vector.load %arg6[%c0_20, %c0_21, %c0_22] : memref<1x8x32xf32, #tpu.memory_space<vmem>>, vector<1x8x32xf32>
    %31 = vector.shape_cast %30 : vector<1x8x32xf32> to vector<8x32xf32>
    %32 = vector.shape_cast %29 : vector<8x32xf32> to vector<1x8x32xf32>
    tpu.vector_store %arg6[%c0_20, %c0_21, %c0_22], %32 {strides = array<i32>} : memref<1x8x32xf32, #tpu.memory_space<vmem>>, vector<1x8x32xf32>,
    return
  }
  func.func @transform_0(%arg0: i32, %arg1: i32) -> (i32, i32, i32) {
    %c0_i32 = arith.constant 0 : i32
    %c0_i32_0 = arith.constant 0 : i32
    return %arg0, %arg1, %c0_i32 : i32, i32, i32
  }
  func.func @transform_1(%arg0: i32, %arg1: i32) -> (i32, i32, i32) {
    %c0_i32 = arith.constant 0 : i32
    %c0_i32_0 = arith.constant 0 : i32
    %c0_i32_1 = arith.constant 0 : i32
    return %arg0, %c0_i32, %c0_i32_0 : i32, i32, i32
  }
  func.func @transform_2(%arg0: i32, %arg1: i32) -> (i32, i32, i32) {
    %c0_i32 = arith.constant 0 : i32
    %c0_i32_0 = arith.constant 0 : i32
    %c0_i32_1 = arith.constant 0 : i32
    return %arg0, %c0_i32, %c0_i32_0 : i32, i32, i32
  }
  func.func @transform_3(%arg0: i32, %arg1: i32) -> (i32, i32) {
    %c0_i32 = arith.constant 0 : i32
    %c0_i32_0 = arith.constant 0 : i32
    return %arg1, %c0_i32 : i32, i32
  }
  func.func @transform_4(%arg0: i32, %arg1: i32) -> (i32, i32, i32) {
    %c0_i32 = arith.constant 0 : i32
    %c0_i32_0 = arith.constant 0 : i32
    return %arg0, %arg1, %c0_i32 : i32, i32, i32
  }
  func.func @transform_5(%arg0: i32, %arg1: i32) -> (i32, i32, i32) {
    %c0_i32 = arith.constant 0 : i32
    %c0_i32_0 = arith.constant 0 : i32
    return %arg0, %arg1, %c0_i32 : i32, i32, i32
  }
}

</mosaic_0001>

<llo_original>
// kernel: tpu_custom_call.1
$region0: #{tpu_custom_call.1}
  #allocation0 [shape = 'u32[]', space=smem, size = 0x4, offset = 0x4, fixed_abs, tag = 'smem constant byte address 0x4 - core index']
  #allocation1 [shape = 'u32[144,128]{1,0:T(1,128)}', space=vmem, size = 0x12000, scoped, tag = 'internal scratch']
  %s0 = inlined_call_operand.hbm [shape: f32[2,8,32], index: 0, kind: input, shape index: {}]
  %s1 = inlined_call_operand.hbm [shape: f32[2,8,32], index: 1, kind: input, shape index: {}]
  %s2 = inlined_call_operand.hbm [shape: f32[2,8,32], index: 2, kind: input, shape index: {}]
  %s3 = inlined_call_operand.vmem [shape: f32[8,8], index: 3, kind: input, shape index: {}]
  %s4 = inlined_call_operand.hbm [shape: f32[2,8,32], index: 4, kind: output, shape index: {0}]
  %s5 = inlined_call_operand.hbm [shape: f32[2,8,8], index: 5, kind: output, shape index: {1}]
  %6 = xla_tuple %s4, %s5
  %s7 = sld [smem:[#allocation0]]
  $region69: #{tpu_custom_call.1} parent=0
    _
  %s9 = ssub.s32 1, %s7
  %s10 = scalar_select 0, %s9, %s7
  $region1: #{tpu_custom_call.1} parent=0
    #allocation2 [shape = 'u8[8192]{0}', space=vmem, size = 0x2000, scoped, tag = 'input window, operand 0']
    #allocation3 [shape = 's32[2]{0}', space=sflag, size = 0x8, scoped, tag = 'scoped memory for tpu_custom_call.1']
    #allocation4 [shape = 's32[2]{0}', space=sflag, size = 0x8, scoped, tag = 'scoped memory for tpu_custom_call.1']
    #allocation5 [shape = 'u8[8192]{0}', space=vmem, size = 0x2000, scoped, tag = 'input window, operand 1']
    #allocation6 [shape = 's32[2]{0}', space=sflag, size = 0x8, scoped, tag = 'scoped memory for tpu_custom_call.1']
    #allocation7 [shape = 'u8[8192]{0}', space=vmem, size = 0x2000, scoped, tag = 'input window, operand 2']
    #allocation8 [shape = 'u8[8192]{0}', space=vmem, size = 0x2000, scoped, tag = 'output window, operand 0']
    #allocation9 [shape = 'u8[8192]{0}', space=vmem, size = 0x2000, scoped, tag = 'output window, operand 1']
    #allocation10 [shape = 's32[2]{0}', space=sflag, size = 0x8, scoped, tag = 'scoped memory for tpu_custom_call.1']
    %11 = vsyncpa [#allocation3], 0
    %s12 = scalar_lea.sflag [#allocation3], 1
    %13 = vsyncpa %s12, 0
    %14 = vsyncpa [#allocation6], 0
    %s15 = scalar_lea.sflag [#allocation6], 1
    %16 = vsyncpa %s15, 0
    %17 = vsyncpa [#allocation4], 0
    %s18 = scalar_lea.sflag [#allocation4], 1
    %19 = vsyncpa %s18, 0
    %20 = vsyncpa [#allocation10], 0
    %s21 = scalar_lea.sflag [#allocation10], 1
    %22 = vsyncpa %s21, 0
    loop: start=0, step=1, limit=4
    $region2: #{tpu_custom_call.1} parent=1 // loop_pre_header
      _
    $region3: #{tpu_custom_call.1} parent=1 // loop_header
      %s24 = sphi 0, %s28
      %p25 = scmp.ge.s32.totalorder %s24, 4
      %s31 = sphi 0, %s43
      %s32 = sphi 0, %s39
      %s33 = sphi 0, %s31
      %s34 = sphi 0, %s32
      %s35 = sphi 0, %s33
      %s36 = sphi 0, %s34
      %s48 = sphi 0, %s50
      %s51 = sphi 0, %s48
      %s52 = sphi 0, %s51
      %s68 = sphi 0, %s52
      %s74 = sphi 0, %s76
      %s77 = sphi 0, %s74
      %s78 = sphi 0, %s77
      %s94 = sphi 0, %s78
      %s100 = sphi 0, %s102
      %s103 = sphi 0, %s100
      %s104 = sphi 0, %s103
      %s120 = sphi 0, %s104
      %s126 = sphi 0, %s128
      %s129 = sphi 0, %s126
      %s130 = sphi 0, %s129
      %s146 = sphi 0, %s130
      %s154 = sphi 0, %s156
      %s157 = sphi 0, %s154
      %s158 = sphi 0, %s157
      %s174 = sphi 0, %s158
      %s182 = sphi 0, %s184
      %s185 = sphi 0, %s182
      %s186 = sphi 0, %s185
      %s202 = sphi 0, %s186
    $region4: #{tpu_custom_call.1} parent=1 // loop_header_branch
      %27 = sbr.rel (%p25) target = $region8
    $region5: #{tpu_custom_call.1} parent=1 // loop_body
      %s29 = ssub.s32 %s24, 1
      %s30 = ssub.s32 %s24, 2
      %s37 = sadd.s32 1, %s32
      %p38 = scmp.ge.s32.totalorder %s37, 1
      %s39 = scalar_select %p38, 0, %s37
      %s40 = sadd.s32 1, %s31
      %s41 = scalar_select %p38, %s40, %s31
      %p42 = scmp.ge.s32.totalorder %s41, 2
      %s43 = scalar_select %p42, 0, %s41
      %s44 = ssub.s32 %s31, %s43
      %s45 = ssub.s32 %s32, %s39
      %s46 = sor.u32 %s44, %s45
      %p47 = scmp.eq.s32.totalorder %s46, 0
      %s49 = sadd.s32 %s48, 1
      %s50 = scalar_select %p47, %s48, %s49
      %p53 = pneg %p47
      %p54 = scmp.eq.s32.totalorder %s24, 1
      %p55 = por %p53, %p54
      %p56 = scmp.ne.s32.totalorder %s48, %s51
      %p57 = scmp.eq.s32.totalorder %s24, 0
      %p58 = por %p56, %p57
      %p59 = scmp.ne.s32.totalorder %s48, %s51
      %p60 = scmp.eq.s32.totalorder %s29, 1
      %p61 = por %p59, %p60
      %p62 = scmp.ne.s32.totalorder %s51, %s52
      %p63 = scmp.eq.s32.totalorder %s29, 0
      %p64 = por %p62, %p63
      %p65 = scmp.ne.s32.totalorder %s51, %s52
      %p66 = scmp.eq.s32.totalorder %s30, 1
      %p67 = por %p65, %p66
      %p69 = scmp.ne.s32.totalorder %s52, %s68
      %p70 = scmp.eq.s32.totalorder %s30, 0
      %p71 = por %p69, %p70
      %s72 = ssub.s32 %s31, %s43
      %p73 = scmp.eq.s32.totalorder %s72, 0
      %s75 = sadd.s32 %s74, 1
      %s76 = scalar_select %p73, %s74, %s75
      %p79 = pneg %p73
      %p80 = scmp.eq.s32.totalorder %s24, 1
      %p81 = por %p79, %p80
      %p82 = scmp.ne.s32.totalorder %s74, %s77
      %p83 = scmp.eq.s32.totalorder %s24, 0
      %p84 = por %p82, %p83
      %p85 = scmp.ne.s32.totalorder %s74, %s77
      %p86 = scmp.eq.s32.totalorder %s29, 1
      %p87 = por %p85, %p86
      %p88 = scmp.ne.s32.totalorder %s77, %s78
      %p89 = scmp.eq.s32.totalorder %s29, 0
      %p90 = por %p88, %p89
      %p91 = scmp.ne.s32.totalorder %s77, %s78
      %p92 = scmp.eq.s32.totalorder %s30, 1
      %p93 = por %p91, %p92
      %p95 = scmp.ne.s32.totalorder %s78, %s94
      %p96 = scmp.eq.s32.totalorder %s30, 0
      %p97 = por %p95, %p96
      %s98 = ssub.s32 %s31, %s43
      %p99 = scmp.eq.s32.totalorder %s98, 0
      %s101 = sadd.s32 %s100, 1
      %s102 = scalar_select %p99, %s100, %s101
      %p105 = pneg %p99
      %p106 = scmp.eq.s32.totalorder %s24, 1
      %p107 = por %p105, %p106
      %p108 = scmp.ne.s32.totalorder %s100, %s103
      %p109 = scmp.eq.s32.totalorder %s24, 0
      %p110 = por %p108, %p109
      %p111 = scmp.ne.s32.totalorder %s100, %s103
      %p112 = scmp.eq.s32.totalorder %s29, 1
      %p113 = por %p111, %p112
      %p114 = scmp.ne.s32.totalorder %s103, %s104
      %p115 = scmp.eq.s32.totalorder %s29, 0
      %p116 = por %p114, %p115
      %p117 = scmp.ne.s32.totalorder %s103, %s104
      %p118 = scmp.eq.s32.totalorder %s30, 1
      %p119 = por %p117, %p118
      %p121 = scmp.ne.s32.totalorder %s104, %s120
      %p122 = scmp.eq.s32.totalorder %s30, 0
      %p123 = por %p121, %p122
      %s124 = ssub.s32 %s32, %s39
      %p125 = scmp.eq.s32.totalorder %s124, 0
      %s127 = sadd.s32 %s126, 1
      %s128 = scalar_select %p125, %s126, %s127
      %p131 = pneg %p125
      %p132 = scmp.eq.s32.totalorder %s24, 1
      %p133 = por %p131, %p132
      %p134 = scmp.ne.s32.totalorder %s126, %s129
      %p135 = scmp.eq.s32.totalorder %s24, 0
      %p136 = por %p134, %p135
      %p137 = scmp.ne.s32.totalorder %s126, %s129
      %p138 = scmp.eq.s32.totalorder %s29, 1
      %p139 = por %p137, %p138
      %p140 = scmp.ne.s32.totalorder %s129, %s130
      %p141 = scmp.eq.s32.totalorder %s29, 0
      %p142 = por %p140, %p141
      %p143 = scmp.ne.s32.totalorder %s129, %s130
      %p144 = scmp.eq.s32.totalorder %s30, 1
      %p145 = por %p143, %p144
      %p147 = scmp.ne.s32.totalorder %s130, %s146
      %p148 = scmp.eq.s32.totalorder %s30, 0
      %p149 = por %p147, %p148
      %s150 = ssub.s32 %s31, %s43
      %s151 = ssub.s32 %s32, %s39
      %s152 = sor.u32 %s150, %s151
      %p153 = scmp.eq.s32.totalorder %s152, 0
      %s155 = sadd.s32 %s154, 1
      %s156 = scalar_select %p153, %s154, %s155
      %p159 = pneg %p153
      %p160 = scmp.eq.s32.totalorder %s24, 1
      %p161 = por %p159, %p160
      %p162 = scmp.ne.s32.totalorder %s154, %s157
      %p163 = scmp.eq.s32.totalorder %s24, 0
      %p164 = por %p162, %p163
      %p165 = scmp.ne.s32.totalorder %s154, %s157
      %p166 = scmp.eq.s32.totalorder %s29, 1
      %p167 = por %p165, %p166
      %p168 = scmp.ne.s32.totalorder %s157, %s158
      %p169 = scmp.eq.s32.totalorder %s29, 0
      %p170 = por %p168, %p169
      %p171 = scmp.ne.s32.totalorder %s157, %s158
      %p172 = scmp.eq.s32.totalorder %s30, 1
      %p173 = por %p171, %p172
      %p175 = scmp.ne.s32.totalorder %s158, %s174
      %p176 = scmp.eq.s32.totalorder %s30, 0
      %p177 = por %p175, %p176
      %s178 = ssub.s32 %s31, %s43
      %s179 = ssub.s32 %s32, %s39
      %s180 = sor.u32 %s178, %s179
      %p181 = scmp.eq.s32.totalorder %s180, 0
      %s183 = sadd.s32 %s182, 1
      %s184 = scalar_select %p181, %s182, %s183
      %p187 = pneg %p181
      %p188 = scmp.eq.s32.totalorder %s24, 1
      %p189 = por %p187, %p188
      %p190 = scmp.ne.s32.totalorder %s182, %s185
      %p191 = scmp.eq.s32.totalorder %s24, 0
      %p192 = por %p190, %p191
      %p193 = scmp.ne.s32.totalorder %s182, %s185
      %p194 = scmp.eq.s32.totalorder %s29, 1
      %p195 = por %p193, %p194
      %p196 = scmp.ne.s32.totalorder %s185, %s186
      %p197 = scmp.eq.s32.totalorder %s29, 0
      %p198 = por %p196, %p197
      %p199 = scmp.ne.s32.totalorder %s185, %s186
      %p200 = scmp.eq.s32.totalorder %s30, 1
      %p201 = por %p199, %p200
      %p203 = scmp.ne.s32.totalorder %s186, %s202
      %p204 = scmp.eq.s32.totalorder %s30, 0
      %p205 = por %p203, %p204
      %p206 = scmp.le.s32.totalorder 1, %s24
      %p207 = scmp.lt.s32.totalorder %s24, 3
      %p208 = pnand %p206, %p207
      %p209 = pneg %p208
      // Predicated region
      $region9: #{tpu_custom_call.1} parent=5 // pred_check
        _
      $region10: #{tpu_custom_call.1} parent=5 // pred_check_branch
        %211 = sbr.rel (%p208) target = $region12
      $region11: #{tpu_custom_call.1} parent=5 // pred_region
        %s212 = ssub.s32 %s24, 1
        // Predicated region
        $region13: #{tpu_custom_call.1} parent=11 // pred_check
          %p213 = pneg %p142
        $region14: #{tpu_custom_call.1} parent=11 // pred_check_branch
          %215 = sbr.rel (%p213) target = $region16
        $region15: #{tpu_custom_call.1} parent=11 // pred_region
          %p216 = scmp.lt.s32.totalorder %s34, 0
          %s217 = scalar_select %p216, %s34, 0
          %s218 = smul.addr %s217, 8
          %s219 = scalar_lea.vmem %s3, %s218
        $region16: #{tpu_custom_call.1} parent=11 // pred_fallthru
          _
      $region12: #{tpu_custom_call.1} parent=5 // pred_fallthru
        _
      %p220 = scmp.lt.s32.totalorder %s24, 2
      // Predicated region
      $region17: #{tpu_custom_call.1} parent=5 // pred_check
        %p221 = pneg %p220
      $region18: #{tpu_custom_call.1} parent=5 // pred_check_branch
        %223 = sbr.rel (%p221) target = $region20
      $region19: #{tpu_custom_call.1} parent=5 // pred_region
        // Predicated region
        $region21: #{tpu_custom_call.1} parent=19 // pred_check
          %p224 = pneg %p58
        $region22: #{tpu_custom_call.1} parent=19 // pred_check_branch
          %226 = sbr.rel (%p224) target = $region24
        $region23: #{tpu_custom_call.1} parent=19 // pred_region
          %s227 = sand.u32 %s48, 1
          %s228 = scalar_lea.sflag [#allocation3], %s227
          %s229 = sand.u32 %s48, 1
          %s230 = smul.addr %s229, 8
          %s231 = scalar_lea.vmem [#allocation2], %s230
          %s233 = ssub.s32 128, 128
          %234 = vsyncadd %s228, %s233
          %s235 = sadd.s32 %s32, %s31
          %s236 = smul.addr %s235, 128
          %s237 = scalar_lea.hbm %s0, %s236
          %s239 = sshll.u32 %s231, 4
          %s240 = int_to_ptr.vmem [resolvable:$true] %s239
          %242 = dma.hbm_to_vmem [thread:$0]  %s237, 128, %s240, %s228
        $region24: #{tpu_custom_call.1} parent=19 // pred_fallthru
          _
        // Predicated region
        $region25: #{tpu_custom_call.1} parent=19 // pred_check
          %p243 = pneg %p84
        $region26: #{tpu_custom_call.1} parent=19 // pred_check_branch
          %245 = sbr.rel (%p243) target = $region28
        $region27: #{tpu_custom_call.1} parent=19 // pred_region
          %s246 = sand.u32 %s24, 1
          %s247 = scalar_lea.sflag [#allocation6], %s246
          %s248 = sand.u32 %s74, 1
          %s249 = smul.addr %s248, 8
          %s250 = scalar_lea.vmem [#allocation5], %s249
          %s252 = ssub.s32 128, 128
          %253 = vsyncadd %s247, %s252
          %s254 = smul.addr %s31, 128
          %s255 = scalar_lea.hbm %s1, %s254
          %s257 = sshll.u32 %s250, 4
          %s258 = int_to_ptr.vmem [resolvable:$true] %s257
          %260 = dma.hbm_to_vmem [thread:$0]  %s255, 128, %s258, %s247
        $region28: #{tpu_custom_call.1} parent=19 // pred_fallthru
          _
        // Predicated region
        $region29: #{tpu_custom_call.1} parent=19 // pred_check
          %p261 = pneg %p110
        $region30: #{tpu_custom_call.1} parent=19 // pred_check_branch
          %263 = sbr.rel (%p261) target = $region32
        $region31: #{tpu_custom_call.1} parent=19 // pred_region
          %s264 = sand.u32 %s24, 1
          %s265 = scalar_lea.sflag [#allocation6], %s264
          %s266 = sand.u32 %s100, 1
          %s267 = smul.addr %s266, 8
          %s268 = scalar_lea.vmem [#allocation7], %s267
          %s270 = ssub.s32 128, 128
          %271 = vsyncadd %s265, %s270
          %s272 = smul.addr %s31, 128
          %s273 = scalar_lea.hbm %s2, %s272
          %s275 = sshll.u32 %s268, 4
          %s276 = int_to_ptr.vmem [resolvable:$true] %s275
          %278 = dma.hbm_to_vmem [thread:$0]  %s273, 128, %s276, %s265
        $region32: #{tpu_custom_call.1} parent=19 // pred_fallthru
          _
      $region20: #{tpu_custom_call.1} parent=5 // pred_fallthru
        _
      %p279 = scmp.le.s32.totalorder 1, %s24
      %p280 = scmp.lt.s32.totalorder %s24, 3
      %p281 = pnand %p279, %p280
      %p282 = pneg %p281
      // Predicated region
      $region33: #{tpu_custom_call.1} parent=5 // pred_check
        _
      $region34: #{tpu_custom_call.1} parent=5 // pred_check_branch
        %284 = sbr.rel (%p281) target = $region36
      $region35: #{tpu_custom_call.1} parent=5 // pred_region
        %s285 = ssub.s32 %s24, 1
        %s286 = sand.u32 %s51, 1
        %s287 = scalar_lea.sflag [#allocation3], %s286
        %s288 = sand.u32 %s51, 1
        %s289 = smul.addr %s288, 8
        %s290 = scalar_lea.vmem [#allocation2], %s289
        // Predicated region
        $region37: #{tpu_custom_call.1} parent=35 // pred_check
          %p291 = pneg %p64
        $region38: #{tpu_custom_call.1} parent=35 // pred_check_branch
          %293 = sbr.rel (%p291) target = $region40
        $region39: #{tpu_custom_call.1} parent=35 // pred_region
          %294 = dma.done %s287, 128
        $region40: #{tpu_custom_call.1} parent=35 // pred_fallthru
          _
        %s295 = sand.u32 %s29, 1
        %s296 = scalar_lea.sflag [#allocation6], %s295
        %s297 = sand.u32 %s77, 1
        %s298 = smul.addr %s297, 8
        %s299 = scalar_lea.vmem [#allocation5], %s298
        // Predicated region
        $region41: #{tpu_custom_call.1} parent=35 // pred_check
          %p300 = pneg %p90
        $region42: #{tpu_custom_call.1} parent=35 // pred_check_branch
          %302 = sbr.rel (%p300) target = $region44
        $region43: #{tpu_custom_call.1} parent=35 // pred_region
          %303 = dma.done %s296, 128
        $region44: #{tpu_custom_call.1} parent=35 // pred_fallthru
          _
        %s304 = sand.u32 %s29, 1
        %s305 = scalar_lea.sflag [#allocation6], %s304
        %s306 = sand.u32 %s103, 1
        %s307 = smul.addr %s306, 8
        %s308 = scalar_lea.vmem [#allocation7], %s307
        // Predicated region
        $region45: #{tpu_custom_call.1} parent=35 // pred_check
          %p309 = pneg %p116
        $region46: #{tpu_custom_call.1} parent=35 // pred_check_branch
          %311 = sbr.rel (%p309) target = $region48
        $region47: #{tpu_custom_call.1} parent=35 // pred_region
          %312 = dma.done %s305, 128
        $region48: #{tpu_custom_call.1} parent=35 // pred_fallthru
          _
        %s313 = sand.u32 %s51, 1
        %s314 = scalar_lea.sflag [#allocation3], %s313
        %s315 = sand.u32 %s51, 1
        %s316 = smul.addr %s315, 8
        %s317 = scalar_lea.vmem [#allocation2], %s316
        %p318 = pneg %p64
        %p319 = pneg %p61
        %s320 = sand.u32 %s29, 1
        %s321 = scalar_lea.sflag [#allocation6], %s320
        %s322 = sand.u32 %s77, 1
        %s323 = smul.addr %s322, 8
        %s324 = scalar_lea.vmem [#allocation5], %s323
        %p325 = pneg %p90
        %p326 = pneg %p87
        %s327 = sand.u32 %s29, 1
        %s328 = scalar_lea.sflag [#allocation6], %s327
        %s329 = sand.u32 %s103, 1
        %s330 = smul.addr %s329, 8
        %s331 = scalar_lea.vmem [#allocation7], %s330
        %p332 = pneg %p116
        %p333 = pneg %p113
        %p334 = scmp.lt.s32.totalorder %s34, 0
        %s335 = scalar_select %p334, %s34, 0
        %s336 = smul.addr %s335, 8
        %s337 = scalar_lea.vmem %s3, %s336
        %p338 = pneg %p142
        %p339 = pneg %p139
        %p340 = pneg %p170
        %p341 = pneg %p167
        %s342 = sand.u32 %s157, 1
        %s343 = scalar_lea.sflag [#allocation4], %s342
        %s344 = sand.u32 %s157, 1
        %s345 = smul.addr %s344, 8
        %s346 = scalar_lea.vmem [#allocation8], %s345
        %p347 = pneg %p198
        %p348 = pneg %p195
        %s349 = sand.u32 %s185, 1
        %s350 = scalar_lea.sflag [#allocation10], %s349
        %s351 = sand.u32 %s185, 1
        %s352 = smul.addr %s351, 8
        %s353 = scalar_lea.vmem [#allocation9], %s352
        %p354 = scmp.lt.s32.totalorder %s34, 0
        %s355 = scalar_select %p354, %s34, 0
        %s356 = smul.addr %s355, 8
        %s357 = scalar_lea.vmem %s3, %s356
        %v358 = vld [vmem:[%s290] sm:$0xff]
        %v359 = vmul.f32 %v358, 0.17677669
        %v360 = vld [vmem:[%s299] sm:$0xff]
        %v361 = vld [vmem:[%s308] sm:$0xff]
        %v362 = vld [vmem:[%s357] sm:$0xff]
        %vm363 = vcmask 261120
        %v365 = vsel %vm363, %v359, 0
        %v368 = vsel %vm363, %v360, 0
        %370 = vmatprep.subr.mxu0 0.0
        %371 = vmatpush1.xpose.msra.mxu0 %v368
        %372 = vmatprep.subr.mxu0 0.0
        %373 = vmatpush1.xpose.msra.mxu0 0.0
        %374 = vmatprep.subr.mxu0 0.0
        %375 = vmatpush1.xpose.msra.mxu0 0.0
        %376 = vmatprep.subr.mxu0 0.0
        %377 = vmatpush1.xpose.msra.mxu0 0.0
        %378 = vmatprep.subr.mxu0 0.0
        %379 = vmatpush1.xpose.msra.mxu0 0.0
        %380 = vmatprep.subr.mxu0 0.0
        %381 = vmatpush1.xpose.msra.mxu0 0.0
        %382 = vmatprep.subr.mxu0 0.0
        %383 = vmatpush1.xpose.msra.mxu0 0.0
        %384 = vmatprep.subr.mxu0 0.0
        %385 = vmatpush1.xpose.msra.mxu0 0.0
        %386 = vmatprep.subr.mxu0 0.0
        %387 = vmatpush1.xpose.msra.mxu0 0.0
        %388 = vmatprep.subr.mxu0 0.0
        %389 = vmatpush1.xpose.msra.mxu0 0.0
        %390 = vmatprep.subr.mxu0 0.0
        %391 = vmatpush1.xpose.msra.mxu0 0.0
        %392 = vmatprep.subr.mxu0 0.0
        %393 = vmatpush1.xpose.msra.mxu0 0.0
        %394 = vmatprep.subr.mxu0 0.0
        %395 = vmatpush1.xpose.msra.mxu0 0.0
        %396 = vmatprep.subr.mxu0 0.0
        %397 = vmatpush1.xpose.msra.mxu0 0.0
        %398 = vmatprep.subr.mxu0 0.0
        %399 = vmatpush1.xpose.msra.mxu0 0.0
        %400 = vmatprep.subr.mxu0 0.0
        %401 = vmatpush1.xpose.msra.mxu0 0.0
        %402 = vmatprep.subr.mxu0 0.0
        %403 = vmatpush1.xpose.msra.mxu0 0.0
        %404 = vmatprep.subr.mxu0 0.0
        %405 = vmatpush1.xpose.msra.mxu0 0.0
        %406 = vmatprep.subr.mxu0 0.0
        %407 = vmatpush1.xpose.msra.mxu0 0.0
        %408 = vmatprep.subr.mxu0 0.0
        %409 = vmatpush1.xpose.msra.mxu0 0.0
        %410 = vmatprep.subr.mxu0 0.0
        %411 = vmatpush1.xpose.msra.mxu0 0.0
        %412 = vmatprep.subr.mxu0 0.0
        %413 = vmatpush1.xpose.msra.mxu0 0.0
        %414 = vmatprep.subr.mxu0 0.0
        %415 = vmatpush1.xpose.msra.mxu0 0.0
        %416 = vmatprep.subr.mxu0 0.0
        %417 = vmatpush1.xpose.msra.mxu0 0.0
        %418 = vmatprep.subr.mxu0 0.0
        %419 = vmatpush1.xpose.msra.mxu0 0.0
        %420 = vmatprep.subr.mxu0 0.0
        %421 = vmatpush1.xpose.msra.mxu0 0.0
        %422 = vmatprep.subr.mxu0 0.0
        %423 = vmatpush1.xpose.msra.mxu0 0.0
        %424 = vmatprep.subr.mxu0 0.0
        %425 = vmatpush1.xpose.msra.mxu0 0.0
        %426 = vmatprep.subr.mxu0 0.0
        %427 = vmatpush1.xpose.msra.mxu0 0.0
        %428 = vmatprep.subr.mxu0 0.0
        %429 = vmatpush1.xpose.msra.mxu0 0.0
        %430 = vmatprep.subr.mxu0 0.0
        %431 = vmatpush1.xpose.msra.mxu0 0.0
        %432 = vmatprep.subr.mxu0 0.0
        %433 = vmatpush1.xpose.msra.mxu0 0.0
        %434 = vmatprep.mubr.f32.mxu0 0.0
        %435 = vmatmul.mubr.f32.gmra.mrb[0].mxu0 %v365
        %v436 = vpop.f32.mrb[0].mxu0
        %v437 = vadd.f32 %v362, %v436
        %v438 = vpop.f32.mrb[0].mxu0
        %439 = vdwg.mxu0
        %vm440 = vcmask 64512
        %v441 = vsel %vm440, %v437, -inf
        %442 = vmax.xlane.f32.xlu0 %v441
        %v443 = vpop.xlane.xlu0 %442
        %v444 = vmax.f32 %v443, -1e+30
        %v445 = vsub.f32 %v437, %v444
        %v446 = vmul.f32 %v445, 1.442695
        %v447 = vpow.pop %v446
        %v448 = vsel %vm440, %v447, 0.0
        %449 = vadd.xlane.f32.xlu0 %v448
        %v450 = vpop.xlane.xlu0 %449
        %vm451 = vcmp.eq.f32.partialorder %v450, 0.0
        %v452 = vsel %vm451, 1.0, %v450
        %v453 = vrcp.pop %v452
        %v454 = vmul.f32 %v447, %v453
        %455 = vst.msk [vmem:[%s353] sm:$0xff] %vm440, %v454
        %v457 = vsel %vm440, %v454, 0
        %459 = vmatprep.subr.mxu0 0.0
        %460 = vmatpush1.msra.mxu0 %v361
        %461 = vmatprep.subr.mxu0 0.0
        %462 = vmatpush1.msra.mxu0 0.0
        %463 = vmatprep.subr.mxu0 0.0
        %464 = vmatpush1.msra.mxu0 0.0
        %465 = vmatprep.subr.mxu0 0.0
        %466 = vmatpush1.msra.mxu0 0.0
        %467 = vmatprep.subr.mxu0 0.0
        %468 = vmatpush1.msra.mxu0 0.0
        %469 = vmatprep.subr.mxu0 0.0
        %470 = vmatpush1.msra.mxu0 0.0
        %471 = vmatprep.subr.mxu0 0.0
        %472 = vmatpush1.msra.mxu0 0.0
        %473 = vmatprep.subr.mxu0 0.0
        %474 = vmatpush1.msra.mxu0 0.0
        %475 = vmatprep.subr.mxu0 0.0
        %476 = vmatpush1.msra.mxu0 0.0
        %477 = vmatprep.subr.mxu0 0.0
        %478 = vmatpush1.msra.mxu0 0.0
        %479 = vmatprep.subr.mxu0 0.0
        %480 = vmatpush1.msra.mxu0 0.0
        %481 = vmatprep.subr.mxu0 0.0
        %482 = vmatpush1.msra.mxu0 0.0
        %483 = vmatprep.subr.mxu0 0.0
        %484 = vmatpush1.msra.mxu0 0.0
        %485 = vmatprep.subr.mxu0 0.0
        %486 = vmatpush1.msra.mxu0 0.0
        %487 = vmatprep.subr.mxu0 0.0
        %488 = vmatpush1.msra.mxu0 0.0
        %489 = vmatprep.subr.mxu0 0.0
        %490 = vmatpush1.msra.mxu0 0.0
        %491 = vmatprep.subr.mxu0 0.0
        %492 = vmatpush1.msra.mxu0 0.0
        %493 = vmatprep.subr.mxu0 0.0
        %494 = vmatpush1.msra.mxu0 0.0
        %495 = vmatprep.subr.mxu0 0.0
        %496 = vmatpush1.msra.mxu0 0.0
        %497 = vmatprep.subr.mxu0 0.0
        %498 = vmatpush1.msra.mxu0 0.0
        %499 = vmatprep.subr.mxu0 0.0
        %500 = vmatpush1.msra.mxu0 0.0
        %501 = vmatprep.subr.mxu0 0.0
        %502 = vmatpush1.msra.mxu0 0.0
        %503 = vmatprep.subr.mxu0 0.0
        %504 = vmatpush1.msra.mxu0 0.0
        %505 = vmatprep.subr.mxu0 0.0
        %506 = vmatpush1.msra.mxu0 0.0
        %507 = vmatprep.subr.mxu0 0.0
        %508 = vmatpush1.msra.mxu0 0.0
        %509 = vmatprep.subr.mxu0 0.0
        %510 = vmatpush1.msra.mxu0 0.0
        %511 = vmatprep.subr.mxu0 0.0
        %512 = vmatpush1.msra.mxu0 0.0
        %513 = vmatprep.subr.mxu0 0.0
        %514 = vmatpush1.msra.mxu0 0.0
        %515 = vmatprep.subr.mxu0 0.0
        %516 = vmatpush1.msra.mxu0 0.0
        %517 = vmatprep.subr.mxu0 0.0
        %518 = vmatpush1.msra.mxu0 0.0
        %519 = vmatprep.subr.mxu0 0.0
        %520 = vmatpush1.msra.mxu0 0.0
        %521 = vmatprep.subr.mxu0 0.0
        %522 = vmatpush1.msra.mxu0 0.0
        %523 = vmatprep.mubr.f32.mxu0 0.0
        %524 = vmatmul.mubr.f32.gmra.mrb[0].mxu0 %v457
        %v525 = vpop.f32.mrb[0].mxu0
        %v526 = vadd.f32 0.0, %v525
        %v527 = vpop.f32.mrb[0].mxu0
        %528 = vdwg.mxu0
        %529 = vst.msk [vmem:[%s346] sm:$0xff] %vm363, %v526
        %s530 = sand.u32 %s157, 1
        %s531 = scalar_lea.sflag [#allocation4], %s530
        %s532 = sand.u32 %s157, 1
        %s533 = smul.addr %s532, 8
        %s534 = scalar_lea.vmem [#allocation8], %s533
        %s535 = sand.u32 %s185, 1
        %s536 = scalar_lea.sflag [#allocation10], %s535
        %s537 = sand.u32 %s185, 1
        %s538 = smul.addr %s537, 8
        %s539 = scalar_lea.vmem [#allocation9], %s538
        // Predicated region
        $region49: #{tpu_custom_call.1} parent=35 // pred_check
          %p540 = pneg %p167
        $region50: #{tpu_custom_call.1} parent=35 // pred_check_branch
          %542 = sbr.rel (%p540) target = $region52
        $region51: #{tpu_custom_call.1} parent=35 // pred_region
          %s544 = ssub.s32 128, 128
          %545 = vsyncadd %s531, %s544
          %s546 = sadd.s32 %s34, %s33
          %s547 = smul.addr %s546, 128
          %s548 = scalar_lea.hbm %s4, %s547
          %s550 = sshll.u32 %s534, 4
          %s551 = int_to_ptr.vmem [resolvable:$true] %s550
          %553 = dma.vmem_to_hbm [thread:$0]  %s551, 128, %s548, %s531
        $region52: #{tpu_custom_call.1} parent=35 // pred_fallthru
          _
        // Predicated region
        $region53: #{tpu_custom_call.1} parent=35 // pred_check
          %p554 = pneg %p195
        $region54: #{tpu_custom_call.1} parent=35 // pred_check_branch
          %556 = sbr.rel (%p554) target = $region56
        $region55: #{tpu_custom_call.1} parent=35 // pred_region
          %s558 = ssub.s32 128, 128
          %559 = vsyncadd %s536, %s558
          %s560 = sadd.s32 %s34, %s33
          %s561 = smul.addr %s560, 128
          %s562 = scalar_lea.hbm %s5, %s561
          %s564 = sshll.u32 %s539, 4
          %s565 = int_to_ptr.vmem [resolvable:$true] %s564
          %567 = dma.vmem_to_hbm [thread:$0]  %s565, 128, %s562, %s536
        $region56: #{tpu_custom_call.1} parent=35 // pred_fallthru
          _
      $region36: #{tpu_custom_call.1} parent=5 // pred_fallthru
        _
      %p568 = scmp.le.s32.totalorder 2, %s24
      // Predicated region
      $region57: #{tpu_custom_call.1} parent=5 // pred_check
        %p569 = pneg %p568
      $region58: #{tpu_custom_call.1} parent=5 // pred_check_branch
        %571 = sbr.rel (%p569) target = $region60
      $region59: #{tpu_custom_call.1} parent=5 // pred_region
        %s572 = ssub.s32 %s24, 2
        // Predicated region
        $region61: #{tpu_custom_call.1} parent=59 // pred_check
          %p573 = pneg %p173
        $region62: #{tpu_custom_call.1} parent=59 // pred_check_branch
          %575 = sbr.rel (%p573) target = $region64
        $region63: #{tpu_custom_call.1} parent=59 // pred_region
          %s576 = sand.u32 %s158, 1
          %s577 = scalar_lea.sflag [#allocation4], %s576
          %s578 = sand.u32 %s158, 1
          %s579 = smul.addr %s578, 8
          %s580 = scalar_lea.vmem [#allocation8], %s579
          %581 = dma.done %s577, 128
        $region64: #{tpu_custom_call.1} parent=59 // pred_fallthru
          _
        // Predicated region
        $region65: #{tpu_custom_call.1} parent=59 // pred_check
          %p582 = pneg %p201
        $region66: #{tpu_custom_call.1} parent=59 // pred_check_branch
          %584 = sbr.rel (%p582) target = $region68
        $region67: #{tpu_custom_call.1} parent=59 // pred_region
          %s585 = sand.u32 %s186, 1
          %s586 = scalar_lea.sflag [#allocation10], %s585
          %s587 = sand.u32 %s186, 1
          %s588 = smul.addr %s587, 8
          %s589 = scalar_lea.vmem [#allocation9], %s588
          %590 = dma.done %s586, 128
        $region68: #{tpu_custom_call.1} parent=59 // pred_fallthru
          _
      $region60: #{tpu_custom_call.1} parent=5 // pred_fallthru
        _
    $region6: #{tpu_custom_call.1} parent=1 // loop_footer
      %s28 = sadd.s32 1, %s24
    $region7: #{tpu_custom_call.1} parent=1 // loop_footer_branch
      %23 = sbr.rel target = $region3
    $region8: #{tpu_custom_call.1} parent=1 // loop_exit
      _
    %591 = vsyncpa [#allocation3], 1
    %s592 = scalar_lea.sflag [#allocation3], 1
    %593 = vsyncpa %s592, 1
    %594 = vsyncpa [#allocation6], 1
    %s595 = scalar_lea.sflag [#allocation6], 1
    %596 = vsyncpa %s595, 1
    %597 = vsyncpa [#allocation4], 1
    %s598 = scalar_lea.sflag [#allocation4], 1
    %599 = vsyncpa %s598, 1
    %600 = vsyncpa [#allocation10], 1
    %s601 = scalar_lea.sflag [#allocation10], 1
    %602 = vsyncpa %s601, 1

</llo_original>
